<compile_context>
chip_gen: v5e
topology: v5e:2x2
jax: 0.10.0
libtpu: 0.0.40
codegen_flags: <defaults>
</compile_context>

<pallas_src>
import jax
import jax.numpy as jnp
import numpy as np
from jax.experimental import pallas as pl
from jax.experimental.pallas import tpu as pltpu


def _round_up(x, m):
    return ((x + m - 1) // m) * m


def _clustering_kernel(x_ref, wb_ref, bb_ref, wh_ref, bh_ref, out_ref, feat_ref):
    k = pl.program_id(1)
    nk = pl.num_programs(1)

    # Zero the feature accumulator at the start of each F reduction
    # (re-initialized for every B tile, so the "parallel" B axis stays safe).
    @pl.when(k == 0)
    def _():
        feat_ref[...] = jnp.zeros_like(feat_ref)

    # Backbone partial matmul: bf16 x bf16 -> f32 accumulate on the MXU.
    feat_ref[...] += jnp.dot(x_ref[...], wb_ref[...],
                             preferred_element_type=jnp.float32)

    # Finalize on the last F tile: bias + ReLU, then ALL cluster heads fused
    # into one lane-dense matmul and a single unmasked store.
    @pl.when(k == nk - 1)
    def _():
        feats = jnp.maximum(feat_ref[...] + bb_ref[...], 0.0)
        heads = jnp.dot(feats.astype(wh_ref.dtype), wh_ref[...],
                        preferred_element_type=jnp.float32) + bh_ref[...]
        out_ref[...] = heads.astype(out_ref.dtype)


def clustering_model_forward(x, wb, bb, wh, bh, *, tk=512, tm=128):
    """ClusteringModel.forward(x, forward_pass='default').

    x  : [B, C, H, W] f32
    wb : [F, D]         synthetic backbone weight (F = C*H*W)
    bb : [D]            synthetic backbone bias
    wh : [nheads, D, K] cluster head weights
    bh : [nheads, K]    cluster head biases
    Returns: list of nheads arrays, each [B, K] f32 (one per cluster head).
    """
    assert tk % 128 == 0
    B = x.shape[0]
    F = x.shape[1] * x.shape[2] * x.shape[3]
    D = wb.shape[1]
    nheads, _, K = wh.shape

    # ---- wrapper-side layout prep (cheap, once) ----
    x_flat = x.reshape(B, F)

    # Fuse heads: Wh_all[:, h*K:(h+1)*K] == wh[h]; pad last dim to 128 lanes.
    KH = nheads * K
    Kp = _round_up(KH, 128)
    wh_all = jnp.transpose(wh, (1, 0, 2)).reshape(D, KH)
    wh_all = jnp.pad(wh_all, ((0, 0), (0, Kp - KH)))
    bh_all = jnp.pad(bh.reshape(1, KH), ((0, 0), (0, Kp - KH)))

    # B tiling (parallel axis).  Small B -> single full-extent block.
    if B > tm:
        Bp = _round_up(B, tm)
        tm_eff = tm
    else:
        Bp = B
        tm_eff = B

    # F tiling (reduction axis), padded with zeros (zero contribution).
    Fp = _round_up(F, 128)
    if Fp <= tk:
        tk_eff = Fp
    else:
        tk_eff = tk
        Fp = _round_up(Fp, tk_eff)

    x_p = jnp.pad(x_flat, ((0, Bp - B), (0, Fp - F))).astype(jnp.bfloat16)
    wb_p = jnp.pad(wb, ((0, Fp - F), (0, 0))).astype(jnp.bfloat16)
    wh_all = wh_all.astype(jnp.bfloat16)
    bb2 = bb.reshape(1, D).astype(jnp.float32)
    bh_all = bh_all.astype(jnp.float32)

    grid = (Bp // tm_eff, Fp // tk_eff)

    out = pl.pallas_call(
        _clustering_kernel,
        out_shape=jax.ShapeDtypeStruct((Bp, Kp), jnp.float32),
        grid_spec=pltpu.PrefetchScalarGridSpec(
            num_scalar_prefetch=0,
            grid=grid,
            in_specs=[
                pl.BlockSpec((tm_eff, tk_eff), lambda i, k: (i, k)),  # x tile
                pl.BlockSpec((tk_eff, D), lambda i, k: (k, 0)),       # wb tile
                pl.BlockSpec((1, D), lambda i, k: (0, 0)),            # bb
                pl.BlockSpec((D, Kp), lambda i, k: (0, 0)),           # fused head W
                pl.BlockSpec((1, Kp), lambda i, k: (0, 0)),           # fused head b
            ],
            out_specs=pl.BlockSpec((tm_eff, Kp), lambda i, k: (i, 0)),
            scratch_shapes=[pltpu.VMEM((tm_eff, D), jnp.float32)],    # features
        ),
        compiler_params=pltpu.CompilerParams(
            # B tiles independent -> parallel (uses v7x's 2nd core);
            # F is a reduction carried in the scratch -> arbitrary.
            dimension_semantics=("parallel", "arbitrary"),
        ),
    )(x_p, wb_p, bb2, wh_all, bh_all)

    # forward_pass='default' returns a Python list, one tensor per head.
    out = out[:B, :KH]
    return [out[:, h * K:(h + 1) * K] for h in range(nheads)]


def _reference(x, wb, bb, wh, bh):
    B = x.shape[0]
    x_flat = x.reshape(B, -1)
    feats = jnp.maximum(x_flat @ wb + bb[None, :], 0.0)
    return [feats @ wh[h] + bh[h][None, :] for h in range(wh.shape[0])]


if __name__ == "__main__":
    # Small shapes consistent with the module's forward.
    B, C, H, W = 2, 4, 16, 16
    backbone_dim = 32
    nclusters = 10
    nheads = 2
    F = C * H * W

    key = jax.random.PRNGKey(0)
    kx, kwb, kbb, kwh, kbh = jax.random.split(key, 5)

    x = jax.random.normal(kx, (B, C, H, W), dtype=jnp.float32)
    wb = jax.random.normal(kwb, (F, backbone_dim), dtype=jnp.float32) * 0.02
    bb = jax.random.normal(kbb, (backbone_dim,), dtype=jnp.float32) * 0.02
    wh = jax.random.normal(kwh, (nheads, backbone_dim, nclusters), dtype=jnp.float32) * 0.1
    bh = jax.random.normal(kbh, (nheads, nclusters), dtype=jnp.float32) * 0.1

    outs = clustering_model_forward(x, wb, bb, wh, bh)
    outs = [jax.block_until_ready(o) for o in outs]

    refs = _reference(x, wb, bb, wh, bh)
    # bf16 inputs with f32 accumulation -> relaxed tolerance vs pure-f32 reference.
    for o, r in zip(outs, refs):
        np.testing.assert_allclose(np.asarray(o), np.asarray(r), rtol=2e-2, atol=2e-2)

    print("KERNEL_OK")
</pallas_src>

<mosaic_0001>
module attributes {stable_mosaic.version = 11 : i64} {
  func.func @_clustering_kernel(%arg0: i32, %arg1: i32, %arg2: memref<2x512xbf16, #tpu.memory_space<vmem>>, %arg3: memref<512x32xbf16, #tpu.memory_space<vmem>>, %arg4: memref<1x32xf32, #tpu.memory_space<vmem>>, %arg5: memref<32x128xbf16, #tpu.memory_space<vmem>>, %arg6: memref<1x128xf32, #tpu.memory_space<vmem>>, %arg7: memref<2x128xf32, #tpu.memory_space<vmem>>, %arg8: memref<2x32xf32, #tpu.memory_space<vmem>>) attributes {dimension_semantics = [#tpu.dimension_semantics<parallel>, #tpu.dimension_semantics<arbitrary>], iteration_bounds = array<i64: 1, 2>, scalar_prefetch = 0 : i64, scratch_operands = 1 : i64, tpu.core_type = #tpu.core_type<tc>, window_params = [{transform_indices = @transform_0, window_bounds = array<i64: 2, 512>}, {transform_indices = @transform_1, window_bounds = array<i64: 512, 32>}, {pipeline_mode = #tpu.pipeline_mode<synchronous>, transform_indices = @transform_2, window_bounds = array<i64: 1, 32>}, {pipeline_mode = #tpu.pipeline_mode<synchronous>, transform_indices = @transform_3, window_bounds = array<i64: 32, 128>}, {pipeline_mode = #tpu.pipeline_mode<synchronous>, transform_indices = @transform_4, window_bounds = array<i64: 1, 128>}, {transform_indices = @transform_5, window_bounds = array<i64: 2, 128>}]} {
    %c0_i32 = arith.constant 0 : i32
    %0 = arith.cmpi eq, %arg1, %c0_i32 : i32
    %1 = arith.extui %0 : i1 to i32
    %c0_i32_0 = arith.constant 0 : i32
    %2 = arith.cmpi ne, %1, %c0_i32_0 : i32
    scf.if %2 {
      %cst_9 = arith.constant 0.000000e+00 : f32
      %12 = vector.broadcast %cst_9 : f32 to vector<2x32xf32>
      %c0_10 = arith.constant 0 : index
      %c0_11 = arith.constant 0 : index
      %13 = vector.load %arg8[%c0_10, %c0_11] : memref<2x32xf32, #tpu.memory_space<vmem>>, vector<2x32xf32>
      tpu.vector_store %arg8[%c0_10, %c0_11], %12 {strides = array<i32>} : memref<2x32xf32, #tpu.memory_space<vmem>>, vector<2x32xf32>,
    } else {
    }
    %c0 = arith.constant 0 : index
    %c0_1 = arith.constant 0 : index
    %3 = vector.load %arg8[%c0, %c0_1] : memref<2x32xf32, #tpu.memory_space<vmem>>, vector<2x32xf32>
    %c0_2 = arith.constant 0 : index
    %c0_3 = arith.constant 0 : index
    %4 = vector.load %arg2[%c0_2, %c0_3] : memref<2x512xbf16, #tpu.memory_space<vmem>>, vector<2x512xbf16>
    %c0_4 = arith.constant 0 : index
    %c0_5 = arith.constant 0 : index
    %5 = vector.load %arg3[%c0_4, %c0_5] : memref<512x32xbf16, #tpu.memory_space<vmem>>, vector<512x32xbf16>
    %cst = arith.constant dense<0.000000e+00> : vector<2x32xf32>
    %6 = tpu.matmul %4, %5, %cst {dimension_numbers = #tpu.dot_dimension_numbers<[1], [0], [0], [1], [0, 0, 1, 1], [], []>} : vector<2x512xbf16>, vector<512x32xbf16>, vector<2x32xf32> -> vector<2x32xf32>
    %7 = arith.addf %3, %6 : vector<2x32xf32>
    %c0_6 = arith.constant 0 : index
    %c0_7 = arith.constant 0 : index
    %8 = vector.load %arg8[%c0_6, %c0_7] : memref<2x32xf32, #tpu.memory_space<vmem>>, vector<2x32xf32>
    tpu.vector_store %arg8[%c0_6, %c0_7], %7 {strides = array<i32>} : memref<2x32xf32, #tpu.memory_space<vmem>>, vector<2x32xf32>,
    %c1_i32 = arith.constant 1 : i32
    %9 = arith.cmpi eq, %arg1, %c1_i32 : i32
    %10 = arith.extui %9 : i1 to i32
    %c0_i32_8 = arith.constant 0 : i32
    %11 = arith.cmpi ne, %10, %c0_i32_8 : i32
    scf.if %11 {
      %c0_9 = arith.constant 0 : index
      %c0_10 = arith.constant 0 : index
      %12 = vector.load %arg8[%c0_9, %c0_10] : memref<2x32xf32, #tpu.memory_space<vmem>>, vector<2x32xf32>
      %c0_11 = arith.constant 0 : index
      %c0_12 = arith.constant 0 : index
      %13 = vector.load %arg4[%c0_11, %c0_12] : memref<1x32xf32, #tpu.memory_space<vmem>>, vector<1x32xf32>
      %14 = vector.broadcast %13 : vector<1x32xf32> to vector<2x32xf32>
      %15 = arith.addf %12, %14 : vector<2x32xf32>
      %cst_13 = arith.constant 0.000000e+00 : f32
      %16 = vector.broadcast %cst_13 : f32 to vector<2x32xf32>
      %17 = arith.maximumf %15, %16 : vector<2x32xf32>
      %18 = arith.truncf %17 : vector<2x32xf32> to vector<2x32xbf16>
      %c0_14 = arith.constant 0 : index
      %c0_15 = arith.constant 0 : index
      %19 = vector.load %arg5[%c0_14, %c0_15] : memref<32x128xbf16, #tpu.memory_space<vmem>>, vector<32x128xbf16>
      %cst_16 = arith.constant dense<0.000000e+00> : vector<2x128xf32>
      %20 = tpu.matmul %18, %19, %cst_16 {dimension_numbers = #tpu.dot_dimension_numbers<[1], [0], [0], [1], [0, 0, 1, 1], [], []>} : vector<2x32xbf16>, vector<32x128xbf16>, vector<2x128xf32> -> vector<2x128xf32>
      %c0_17 = arith.constant 0 : index
      %c0_18 = arith.constant 0 : index
      %21 = vector.load %arg6[%c0_17, %c0_18] : memref<1x128xf32, #tpu.memory_space<vmem>>, vector<1x128xf32>
      %22 = vector.broadcast %21 : vector<1x128xf32> to vector<2x128xf32>
      %23 = arith.addf %20, %22 : vector<2x128xf32>
      %c0_19 = arith.constant 0 : index
      %c0_20 = arith.constant 0 : index
      %24 = vector.load %arg7[%c0_19, %c0_20] : memref<2x128xf32, #tpu.memory_space<vmem>>, vector<2x128xf32>
      tpu.vector_store %arg7[%c0_19, %c0_20], %23 {strides = array<i32>} : memref<2x128xf32, #tpu.memory_space<vmem>>, vector<2x128xf32>,
    } else {
    }
    return
  }
  func.func @transform_0(%arg0: i32, %arg1: i32) -> (i32, i32) {
    %c0_i32 = arith.constant 0 : i32
    return %arg0, %arg1 : i32, i32
  }
  func.func @transform_1(%arg0: i32, %arg1: i32) -> (i32, i32) {
    %c0_i32 = arith.constant 0 : i32
    %c0_i32_0 = arith.constant 0 : i32
    return %arg1, %c0_i32 : i32, i32
  }
  func.func @transform_2(%arg0: i32, %arg1: i32) -> (i32, i32) {
    %c0_i32 = arith.constant 0 : i32
    %c0_i32_0 = arith.constant 0 : i32
    %c0_i32_1 = arith.constant 0 : i32
    return %c0_i32, %c0_i32_0 : i32, i32
  }
  func.func @transform_3(%arg0: i32, %arg1: i32) -> (i32, i32) {
    %c0_i32 = arith.constant 0 : i32
    %c0_i32_0 = arith.constant 0 : i32
    %c0_i32_1 = arith.constant 0 : i32
    return %c0_i32, %c0_i32_0 : i32, i32
  }
  func.func @transform_4(%arg0: i32, %arg1: i32) -> (i32, i32) {
    %c0_i32 = arith.constant 0 : i32
    %c0_i32_0 = arith.constant 0 : i32
    %c0_i32_1 = arith.constant 0 : i32
    return %c0_i32, %c0_i32_0 : i32, i32
  }
  func.func @transform_5(%arg0: i32, %arg1: i32) -> (i32, i32) {
    %c0_i32 = arith.constant 0 : i32
    %c0_i32_0 = arith.constant 0 : i32
    return %arg0, %c0_i32 : i32, i32
  }
}

</mosaic_0001>

<llo_original>
// kernel: tpu_custom_call.1
$region0: #{tpu_custom_call.1}
  #allocation0 [shape = 'u32[]', space=smem, size = 0x4, offset = 0x4, fixed_abs, tag = 'smem constant byte address 0x4 - core index']
  #allocation1 [shape = 'u32[72,128]{1,0:T(1,128)}', space=vmem, size = 0x9000, scoped, tag = 'internal scratch']
  #allocation2 [shape = 'f32[2,32]{1,0:T(2,128)}', space=vmem, size = 0x400, scoped, tag = 'scratch operand']
  %s0 = inlined_call_operand.vmem [shape: bf16[2,1024], index: 0, kind: input, shape index: {}]
  %s1 = inlined_call_operand.vmem [shape: bf16[1024,32], index: 1, kind: input, shape index: {}]
  %s2 = inlined_call_operand.vmem [shape: f32[1,32], index: 2, kind: input, shape index: {}]
  %s3 = inlined_call_operand.vmem [shape: bf16[32,128], index: 3, kind: input, shape index: {}]
  %s4 = inlined_call_operand.vmem [shape: f32[1,128], index: 4, kind: input, shape index: {}]
  %s5 = inlined_call_operand.hbm [shape: f32[2,128], index: 5, kind: output, shape index: {}]
  %s6 = sld [smem:[#allocation0]]
  $region61: #{tpu_custom_call.1} parent=0
    _
  %s8 = ssub.s32 1, %s6
  %s9 = scalar_select 0, %s8, %s6
  $region1: #{tpu_custom_call.1} parent=0
    #allocation3 [shape = 'u8[1024]{0}', space=vmem, size = 0x400, scoped, tag = 'output window, operand 0, single buffered']
    #allocation4 [shape = 's32[2]{0}', space=sflag, size = 0x8, scoped, tag = 'scoped memory for tpu_custom_call.1']
    %10 = vsyncpa [#allocation4], 0
    loop: start=0, step=1, limit=4
    $region2: #{tpu_custom_call.1} parent=1 // loop_pre_header
      _
    $region3: #{tpu_custom_call.1} parent=1 // loop_header
      %s12 = sphi 0, %s16
      %p13 = scmp.ge.s32.totalorder %s12, 4
      %s19 = sphi 0, %s31
      %s20 = sphi 0, %s27
      %s21 = sphi 0, %s19
      %s22 = sphi 0, %s20
      %s23 = sphi 0, %s21
      %s24 = sphi 0, %s22
      %s36 = sphi 0, %s38
      %s39 = sphi 0, %s36
      %s40 = sphi 0, %s39
      %s56 = sphi 0, %s40
      %s62 = sphi 0, %s64
      %s65 = sphi 0, %s62
      %s66 = sphi 0, %s65
      %s82 = sphi 0, %s66
      %s86 = sphi 0, %s86
      %s88 = sphi 0, %s86
      %s89 = sphi 0, %s88
      %s103 = sphi 0, %s89
      %s107 = sphi 0, %s107
      %s109 = sphi 0, %s107
      %s110 = sphi 0, %s109
      %s124 = sphi 0, %s110
      %s128 = sphi 0, %s128
      %s130 = sphi 0, %s128
      %s131 = sphi 0, %s130
      %s145 = sphi 0, %s131
      %s151 = sphi 0, %s153
      %s154 = sphi 0, %s151
      %s155 = sphi 0, %s154
      %s171 = sphi 0, %s155
    $region4: #{tpu_custom_call.1} parent=1 // loop_header_branch
      %15 = sbr.rel (%p13) target = $region8
    $region5: #{tpu_custom_call.1} parent=1 // loop_body
      %s17 = ssub.s32 %s12, 1
      %s18 = ssub.s32 %s12, 2
      %s25 = sadd.s32 1, %s20
      %p26 = scmp.ge.s32.totalorder %s25, 2
      %s27 = scalar_select %p26, 0, %s25
      %s28 = sadd.s32 1, %s19
      %s29 = scalar_select %p26, %s28, %s19
      %p30 = scmp.ge.s32.totalorder %s29, 1
      %s31 = scalar_select %p30, 0, %s29
      %s32 = ssub.s32 %s19, %s31
      %s33 = ssub.s32 %s20, %s27
      %s34 = sor.u32 %s32, %s33
      %p35 = scmp.eq.s32.totalorder %s34, 0
      %s37 = sadd.s32 %s36, 1
      %s38 = scalar_select %p35, %s36, %s37
      %p41 = pneg %p35
      %p42 = scmp.eq.s32.totalorder %s12, 1
      %p43 = por %p41, %p42
      %p44 = scmp.ne.s32.totalorder %s36, %s39
      %p45 = scmp.eq.s32.totalorder %s12, 0
      %p46 = por %p44, %p45
      %p47 = scmp.ne.s32.totalorder %s36, %s39
      %p48 = scmp.eq.s32.totalorder %s17, 1
      %p49 = por %p47, %p48
      %p50 = scmp.ne.s32.totalorder %s39, %s40
      %p51 = scmp.eq.s32.totalorder %s17, 0
      %p52 = por %p50, %p51
      %p53 = scmp.ne.s32.totalorder %s39, %s40
      %p54 = scmp.eq.s32.totalorder %s18, 1
      %p55 = por %p53, %p54
      %p57 = scmp.ne.s32.totalorder %s40, %s56
      %p58 = scmp.eq.s32.totalorder %s18, 0
      %p59 = por %p57, %p58
      %s60 = ssub.s32 %s20, %s27
      %p61 = scmp.eq.s32.totalorder %s60, 0
      %s63 = sadd.s32 %s62, 1
      %s64 = scalar_select %p61, %s62, %s63
      %p67 = pneg %p61
      %p68 = scmp.eq.s32.totalorder %s12, 1
      %p69 = por %p67, %p68
      %p70 = scmp.ne.s32.totalorder %s62, %s65
      %p71 = scmp.eq.s32.totalorder %s12, 0
      %p72 = por %p70, %p71
      %p73 = scmp.ne.s32.totalorder %s62, %s65
      %p74 = scmp.eq.s32.totalorder %s17, 1
      %p75 = por %p73, %p74
      %p76 = scmp.ne.s32.totalorder %s65, %s66
      %p77 = scmp.eq.s32.totalorder %s17, 0
      %p78 = por %p76, %p77
      %p79 = scmp.ne.s32.totalorder %s65, %s66
      %p80 = scmp.eq.s32.totalorder %s18, 1
      %p81 = por %p79, %p80
      %p83 = scmp.ne.s32.totalorder %s66, %s82
      %p84 = scmp.eq.s32.totalorder %s18, 0
      %p85 = por %p83, %p84
      %s87 = sadd.s32 %s86, 1
      %p90 = scmp.eq.s32.totalorder %s12, 1
      %p91 = scmp.ne.s32.totalorder %s86, %s88
      %p92 = scmp.eq.s32.totalorder %s12, 0
      %p93 = por %p91, %p92
      %p94 = scmp.ne.s32.totalorder %s86, %s88
      %p95 = scmp.eq.s32.totalorder %s17, 1
      %p96 = por %p94, %p95
      %p97 = scmp.ne.s32.totalorder %s88, %s89
      %p98 = scmp.eq.s32.totalorder %s17, 0
      %p99 = por %p97, %p98
      %p100 = scmp.ne.s32.totalorder %s88, %s89
      %p101 = scmp.eq.s32.totalorder %s18, 1
      %p102 = por %p100, %p101
      %p104 = scmp.ne.s32.totalorder %s89, %s103
      %p105 = scmp.eq.s32.totalorder %s18, 0
      %p106 = por %p104, %p105
      %s108 = sadd.s32 %s107, 1
      %p111 = scmp.eq.s32.totalorder %s12, 1
      %p112 = scmp.ne.s32.totalorder %s107, %s109
      %p113 = scmp.eq.s32.totalorder %s12, 0
      %p114 = por %p112, %p113
      %p115 = scmp.ne.s32.totalorder %s107, %s109
      %p116 = scmp.eq.s32.totalorder %s17, 1
      %p117 = por %p115, %p116
      %p118 = scmp.ne.s32.totalorder %s109, %s110
      %p119 = scmp.eq.s32.totalorder %s17, 0
      %p120 = por %p118, %p119
      %p121 = scmp.ne.s32.totalorder %s109, %s110
      %p122 = scmp.eq.s32.totalorder %s18, 1
      %p123 = por %p121, %p122
      %p125 = scmp.ne.s32.totalorder %s110, %s124
      %p126 = scmp.eq.s32.totalorder %s18, 0
      %p127 = por %p125, %p126
      %s129 = sadd.s32 %s128, 1
      %p132 = scmp.eq.s32.totalorder %s12, 1
      %p133 = scmp.ne.s32.totalorder %s128, %s130
      %p134 = scmp.eq.s32.totalorder %s12, 0
      %p135 = por %p133, %p134
      %p136 = scmp.ne.s32.totalorder %s128, %s130
      %p137 = scmp.eq.s32.totalorder %s17, 1
      %p138 = por %p136, %p137
      %p139 = scmp.ne.s32.totalorder %s130, %s131
      %p140 = scmp.eq.s32.totalorder %s17, 0
      %p141 = por %p139, %p140
      %p142 = scmp.ne.s32.totalorder %s130, %s131
      %p143 = scmp.eq.s32.totalorder %s18, 1
      %p144 = por %p142, %p143
      %p146 = scmp.ne.s32.totalorder %s131, %s145
      %p147 = scmp.eq.s32.totalorder %s18, 0
      %p148 = por %p146, %p147
      %s149 = ssub.s32 %s19, %s31
      %p150 = scmp.eq.s32.totalorder %s149, 0
      %s152 = sadd.s32 %s151, 1
      %s153 = scalar_select %p150, %s151, %s152
      %p156 = pneg %p150
      %p157 = scmp.eq.s32.totalorder %s12, 1
      %p158 = por %p156, %p157
      %p159 = scmp.ne.s32.totalorder %s151, %s154
      %p160 = scmp.eq.s32.totalorder %s12, 0
      %p161 = por %p159, %p160
      %p162 = scmp.ne.s32.totalorder %s151, %s154
      %p163 = scmp.eq.s32.totalorder %s17, 1
      %p164 = por %p162, %p163
      %p165 = scmp.ne.s32.totalorder %s154, %s155
      %p166 = scmp.eq.s32.totalorder %s17, 0
      %p167 = por %p165, %p166
      %p168 = scmp.ne.s32.totalorder %s154, %s155
      %p169 = scmp.eq.s32.totalorder %s18, 1
      %p170 = por %p168, %p169
      %p172 = scmp.ne.s32.totalorder %s155, %s171
      %p173 = scmp.eq.s32.totalorder %s18, 0
      %p174 = por %p172, %p173
      %p175 = scmp.le.s32.totalorder 1, %s12
      %p176 = scmp.lt.s32.totalorder %s12, 3
      %p177 = pnand %p175, %p176
      %p178 = pneg %p177
      // Predicated region
      $region9: #{tpu_custom_call.1} parent=5 // pred_check
        _
      $region10: #{tpu_custom_call.1} parent=5 // pred_check_branch
        %180 = sbr.rel (%p177) target = $region12
      $region11: #{tpu_custom_call.1} parent=5 // pred_region
        %s181 = ssub.s32 %s12, 1
        // Predicated region
        $region13: #{tpu_custom_call.1} parent=11 // pred_check
          %p182 = pneg %p99
        $region14: #{tpu_custom_call.1} parent=11 // pred_check_branch
          %184 = sbr.rel (%p182) target = $region16
        $region15: #{tpu_custom_call.1} parent=11 // pred_region
          _
        $region16: #{tpu_custom_call.1} parent=11 // pred_fallthru
          _
        // Predicated region
        $region17: #{tpu_custom_call.1} parent=11 // pred_check
          %p185 = pneg %p120
        $region18: #{tpu_custom_call.1} parent=11 // pred_check_branch
          %187 = sbr.rel (%p185) target = $region20
        $region19: #{tpu_custom_call.1} parent=11 // pred_region
          _
        $region20: #{tpu_custom_call.1} parent=11 // pred_fallthru
          _
        // Predicated region
        $region21: #{tpu_custom_call.1} parent=11 // pred_check
          %p188 = pneg %p141
        $region22: #{tpu_custom_call.1} parent=11 // pred_check_branch
          %190 = sbr.rel (%p188) target = $region24
        $region23: #{tpu_custom_call.1} parent=11 // pred_region
          _
        $region24: #{tpu_custom_call.1} parent=11 // pred_fallthru
          _
      $region12: #{tpu_custom_call.1} parent=5 // pred_fallthru
        _
      %p191 = scmp.lt.s32.totalorder %s12, 2
      // Predicated region
      $region25: #{tpu_custom_call.1} parent=5 // pred_check
        %p192 = pneg %p191
      $region26: #{tpu_custom_call.1} parent=5 // pred_check_branch
        %194 = sbr.rel (%p192) target = $region28
      $region27: #{tpu_custom_call.1} parent=5 // pred_region
        // Predicated region
        $region29: #{tpu_custom_call.1} parent=27 // pred_check
          %p195 = pneg %p46
        $region30: #{tpu_custom_call.1} parent=27 // pred_check_branch
          %197 = sbr.rel (%p195) target = $region32
        $region31: #{tpu_custom_call.1} parent=27 // pred_region
          %s198 = smul.u32 4, %s20
          %p199 = scmp.lt.s32.totalorder %s19, 0
          %s200 = scalar_select %p199, %s19, 0
          %p201 = scmp.lt.s32.totalorder %s198, 7
          %s202 = scalar_select %p201, %s198, 7
          %s203 = smul.addr %s200, 8
          %s204 = sadd.s32 %s202, %s203
          %s205 = scalar_lea.vmem %s0, %s204
          %s206 = smul.u32 4, %s20
        $region32: #{tpu_custom_call.1} parent=27 // pred_fallthru
          _
        // Predicated region
        $region33: #{tpu_custom_call.1} parent=27 // pred_check
          %p207 = pneg %p72
        $region34: #{tpu_custom_call.1} parent=27 // pred_check_branch
          %209 = sbr.rel (%p207) target = $region36
        $region35: #{tpu_custom_call.1} parent=27 // pred_region
          %s210 = smul.u32 64, %s20
          %p211 = scmp.lt.s32.totalorder %s210, 127
          %s212 = scalar_select %p211, %s210, 127
          %s213 = smul.addr %s212, 4
          %s214 = scalar_lea.vmem %s1, %s213
          %s215 = smul.u32 64, %s20
        $region36: #{tpu_custom_call.1} parent=27 // pred_fallthru
          _
      $region28: #{tpu_custom_call.1} parent=5 // pred_fallthru
        _
      %p216 = scmp.le.s32.totalorder 1, %s12
      %p217 = scmp.lt.s32.totalorder %s12, 3
      %p218 = pnand %p216, %p217
      %p219 = pneg %p218
      // Predicated region
      $region37: #{tpu_custom_call.1} parent=5 // pred_check
        _
      $region38: #{tpu_custom_call.1} parent=5 // pred_check_branch
        %221 = sbr.rel (%p218) target = $region40
      $region39: #{tpu_custom_call.1} parent=5 // pred_region
        %s222 = ssub.s32 %s12, 1
        %s223 = smul.u32 4, %s22
        %p224 = scmp.lt.s32.totalorder %s21, 0
        %s225 = scalar_select %p224, %s21, 0
        %p226 = scmp.lt.s32.totalorder %s223, 7
        %s227 = scalar_select %p226, %s223, 7
        %s228 = smul.addr %s225, 8
        %s229 = sadd.s32 %s227, %s228
        %s230 = scalar_lea.vmem %s0, %s229
        %p231 = pneg %p52
        %p232 = pneg %p49
        %s233 = smul.u32 64, %s22
        %p234 = scmp.lt.s32.totalorder %s233, 127
        %s235 = scalar_select %p234, %s233, 127
        %s236 = smul.addr %s235, 4
        %s237 = scalar_lea.vmem %s1, %s236
        %p238 = pneg %p78
        %p239 = pneg %p75
        %p240 = pneg %p99
        %p241 = pneg %p96
        %p242 = pneg %p120
        %p243 = pneg %p117
        %p244 = pneg %p141
        %p245 = pneg %p138
        %p246 = pneg %p167
        %p247 = pneg %p164
        %s248 = smul.u32 4, %s22
        %p249 = scmp.lt.s32.totalorder %s21, 0
        %s250 = scalar_select %p249, %s21, 0
        %p251 = scmp.lt.s32.totalorder %s248, 7
        %s252 = scalar_select %p251, %s248, 7
        %s253 = smul.addr %s250, 8
        %s254 = sadd.s32 %s252, %s253
        %s255 = scalar_lea.vmem %s0, %s254
        %s256 = smul.u32 4, %s22
        %s257 = smul.u32 64, %s22
        %p258 = scmp.lt.s32.totalorder %s257, 127
        %s259 = scalar_select %p258, %s257, 127
        %s260 = smul.addr %s259, 4
        %s261 = scalar_lea.vmem %s1, %s260
        %s262 = smul.u32 64, %s22
        %p264 = scmp.eq.s32.totalorder %s22, 0
        // Predicated region
        $region41: #{tpu_custom_call.1} parent=39 // pred_check
          %p265 = pneg %p264
        $region42: #{tpu_custom_call.1} parent=39 // pred_check_branch
          %267 = sbr.rel (%p265) target = $region44
        $region43: #{tpu_custom_call.1} parent=39 // pred_region
          %vm268 = vcmask 254976
          %269 = vst.msk [vmem:[#allocation2] sm:$0x3] %vm268, 0.0
        $region44: #{tpu_custom_call.1} parent=39 // pred_fallthru
          _
        %v270 = vld [vmem:[#allocation2] sm:$0x3]
        %v271 = vld [vmem:[%s255] sm:$0xf]
        %v272 = vld [vmem:[%s261] sm:$0xf]
        %v273 = vld [vmem:[%s261 + $0x4] sm:$0xf]
        %v274 = vld [vmem:[%s261 + $0x8] sm:$0xf]
        %v275 = vld [vmem:[%s261 + $0xc] sm:$0xf]
        %v276 = vld [vmem:[%s261 + $0x10] sm:$0xf]
        %v277 = vld [vmem:[%s261 + $0x14] sm:$0xf]
        %v278 = vld [vmem:[%s261 + $0x18] sm:$0xf]
        %v279 = vld [vmem:[%s261 + $0x1c] sm:$0xf]
        %v280 = vld [vmem:[%s261 + $0x20] sm:$0xf]
        %v281 = vld [vmem:[%s261 + $0x24] sm:$0xf]
        %v282 = vld [vmem:[%s261 + $0x28] sm:$0xf]
        %v283 = vld [vmem:[%s261 + $0x2c] sm:$0xf]
        %v284 = vld [vmem:[%s261 + $0x30] sm:$0xf]
        %v285 = vld [vmem:[%s261 + $0x34] sm:$0xf]
        %v286 = vld [vmem:[%s261 + $0x38] sm:$0xf]
        %v287 = vld [vmem:[%s261 + $0x3c] sm:$0xf]
        %v288 = vld [vmem:[%s261 + $0x40] sm:$0xf]
        %v289 = vld [vmem:[%s261 + $0x44] sm:$0xf]
        %v290 = vld [vmem:[%s261 + $0x48] sm:$0xf]
        %v291 = vld [vmem:[%s261 + $0x4c] sm:$0xf]
        %v292 = vld [vmem:[%s261 + $0x50] sm:$0xf]
        %v293 = vld [vmem:[%s261 + $0x54] sm:$0xf]
        %v294 = vld [vmem:[%s261 + $0x58] sm:$0xf]
        %v295 = vld [vmem:[%s261 + $0x5c] sm:$0xf]
        %v296 = vld [vmem:[%s261 + $0x60] sm:$0xf]
        %v297 = vld [vmem:[%s261 + $0x64] sm:$0xf]
        %v298 = vld [vmem:[%s261 + $0x68] sm:$0xf]
        %v299 = vld [vmem:[%s261 + $0x6c] sm:$0xf]
        %v300 = vld [vmem:[%s261 + $0x70] sm:$0xf]
        %v301 = vld [vmem:[%s261 + $0x74] sm:$0xf]
        %v302 = vld [vmem:[%s261 + $0x78] sm:$0xf]
        %v303 = vld [vmem:[%s261 + $0x7c] sm:$0xf]
        %v304 = vld [vmem:[%s261 + $0x80] sm:$0xf]
        %v305 = vld [vmem:[%s261 + $0x84] sm:$0xf]
        %v306 = vld [vmem:[%s261 + $0x88] sm:$0xf]
        %v307 = vld [vmem:[%s261 + $0x8c] sm:$0xf]
        %v308 = vld [vmem:[%s261 + $0x90] sm:$0xf]
        %v309 = vld [vmem:[%s261 + $0x94] sm:$0xf]
        %v310 = vld [vmem:[%s261 + $0x98] sm:$0xf]
        %v311 = vld [vmem:[%s261 + $0x9c] sm:$0xf]
        %v312 = vld [vmem:[%s261 + $0xa0] sm:$0xf]
        %v313 = vld [vmem:[%s261 + $0xa4] sm:$0xf]
        %v314 = vld [vmem:[%s261 + $0xa8] sm:$0xf]
        %v315 = vld [vmem:[%s261 + $0xac] sm:$0xf]
        %v316 = vld [vmem:[%s261 + $0xb0] sm:$0xf]
        %v317 = vld [vmem:[%s261 + $0xb4] sm:$0xf]
        %v318 = vld [vmem:[%s261 + $0xb8] sm:$0xf]
        %v319 = vld [vmem:[%s261 + $0xbc] sm:$0xf]
        %v320 = vld [vmem:[%s261 + $0xc0] sm:$0xf]
        %v321 = vld [vmem:[%s261 + $0xc4] sm:$0xf]
        %v322 = vld [vmem:[%s261 + $0xc8] sm:$0xf]
        %v323 = vld [vmem:[%s261 + $0xcc] sm:$0xf]
        %v324 = vld [vmem:[%s261 + $0xd0] sm:$0xf]
        %v325 = vld [vmem:[%s261 + $0xd4] sm:$0xf]
        %v326 = vld [vmem:[%s261 + $0xd8] sm:$0xf]
        %v327 = vld [vmem:[%s261 + $0xdc] sm:$0xf]
        %v328 = vld [vmem:[%s261 + $0xe0] sm:$0xf]
        %v329 = vld [vmem:[%s261 + $0xe4] sm:$0xf]
        %v330 = vld [vmem:[%s261 + $0xe8] sm:$0xf]
        %v331 = vld [vmem:[%s261 + $0xec] sm:$0xf]
        %v332 = vld [vmem:[%s261 + $0xf0] sm:$0xf]
        %v333 = vld [vmem:[%s261 + $0xf4] sm:$0xf]
        %v334 = vld [vmem:[%s261 + $0xf8] sm:$0xf]
        %v335 = vld [vmem:[%s261 + $0xfc] sm:$0xf]
        %337 = vst [vmem:[#allocation1] ss:$9 sm:$0xff] %v271
        %v338 = vld [vmem:[#allocation1] sm:$0xff]
        %v339 = vld [vmem:[#allocation1 + $0x9] sm:$0xff]
        %v340 = vld [vmem:[#allocation1 + $0x12] sm:$0xff]
        %v341 = vld [vmem:[#allocation1 + $0x1b] sm:$0xff]
        %v410 = vunpack.c.l.b16 %v272
        %v411 = vunpack.c.l.b16 %v273
        %v412 = vunpack.c.l.b16 %v274
        %v413 = vunpack.c.l.b16 %v275
        %v414 = vunpack.c.l.b16 %v276
        %v415 = vunpack.c.l.b16 %v277
        %v416 = vunpack.c.l.b16 %v278
        %v417 = vunpack.c.l.b16 %v279
        %v418 = vunpack.c.l.b16 %v280
        %v419 = vunpack.c.l.b16 %v281
        %v420 = vunpack.c.l.b16 %v282
        %v421 = vunpack.c.l.b16 %v283
        %v422 = vunpack.c.l.b16 %v284
        %v423 = vunpack.c.l.b16 %v285
        %v424 = vunpack.c.l.b16 %v286
        %v425 = vunpack.c.l.b16 %v287
        %v426 = vunpack.c.l.b16 %v288
        %v427 = vunpack.c.l.b16 %v289
        %v428 = vunpack.c.l.b16 %v290
        %v429 = vunpack.c.l.b16 %v291
        %v430 = vunpack.c.l.b16 %v292
        %v431 = vunpack.c.l.b16 %v293
        %v432 = vunpack.c.l.b16 %v294
        %v433 = vunpack.c.l.b16 %v295
        %v434 = vunpack.c.l.b16 %v296
        %v435 = vunpack.c.l.b16 %v297
        %v436 = vunpack.c.l.b16 %v298
        %v437 = vunpack.c.l.b16 %v299
        %v438 = vunpack.c.l.b16 %v300
        %v439 = vunpack.c.l.b16 %v301
        %v440 = vunpack.c.l.b16 %v302
        %v441 = vunpack.c.l.b16 %v303
        %v442 = vunpack.c.l.b16 %v304
        %v443 = vunpack.c.l.b16 %v305
        %v444 = vunpack.c.l.b16 %v306
        %v445 = vunpack.c.l.b16 %v307
        %v446 = vunpack.c.l.b16 %v308
        %v447 = vunpack.c.l.b16 %v309
        %v448 = vunpack.c.l.b16 %v310
        %v449 = vunpack.c.l.b16 %v311
        %v450 = vunpack.c.l.b16 %v312
        %v451 = vunpack.c.l.b16 %v313
        %v452 = vunpack.c.l.b16 %v314
        %v453 = vunpack.c.l.b16 %v315
        %v454 = vunpack.c.l.b16 %v316
        %v455 = vunpack.c.l.b16 %v317
        %v456 = vunpack.c.l.b16 %v318
        %v457 = vunpack.c.l.b16 %v319
        %v458 = vunpack.c.l.b16 %v320
        %v459 = vunpack.c.l.b16 %v321
        %v460 = vunpack.c.l.b16 %v322
        %v461 = vunpack.c.l.b16 %v323
        %v462 = vunpack.c.l.b16 %v324
        %v463 = vunpack.c.l.b16 %v325
        %v464 = vunpack.c.l.b16 %v326
        %v465 = vunpack.c.l.b16 %v327
        %v466 = vunpack.c.l.b16 %v328
        %v467 = vunpack.c.l.b16 %v329
        %v468 = vunpack.c.l.b16 %v330
        %v469 = vunpack.c.l.b16 %v331
        %v470 = vunpack.c.l.b16 %v332
        %v471 = vunpack.c.l.b16 %v333
        %v472 = vunpack.c.l.b16 %v334
        %v473 = vunpack.c.l.b16 %v335
        %v474 = vpack.c.b16 %v411, %v410
        %v475 = vpack.c.b16 %v413, %v412
        %v476 = vpack.c.b16 %v415, %v414
        %v477 = vpack.c.b16 %v417, %v416
        %v478 = vpack.c.b16 %v419, %v418
        %v479 = vpack.c.b16 %v421, %v420
        %v480 = vpack.c.b16 %v423, %v422
        %v481 = vpack.c.b16 %v425, %v424
        %v482 = vpack.c.b16 %v427, %v426
        %v483 = vpack.c.b16 %v429, %v428
        %v484 = vpack.c.b16 %v431, %v430
        %v485 = vpack.c.b16 %v433, %v432
        %v486 = vpack.c.b16 %v435, %v434
        %v487 = vpack.c.b16 %v437, %v436
        %v488 = vpack.c.b16 %v439, %v438
        %v489 = vpack.c.b16 %v441, %v440
        %v490 = vpack.c.b16 %v443, %v442
        %v491 = vpack.c.b16 %v445, %v444
        %v492 = vpack.c.b16 %v447, %v446
        %v493 = vpack.c.b16 %v449, %v448
        %v494 = vpack.c.b16 %v451, %v450
        %v495 = vpack.c.b16 %v453, %v452
        %v496 = vpack.c.b16 %v455, %v454
        %v497 = vpack.c.b16 %v457, %v456
        %v498 = vpack.c.b16 %v459, %v458
        %v499 = vpack.c.b16 %v461, %v460
        %v500 = vpack.c.b16 %v463, %v462
        %v501 = vpack.c.b16 %v465, %v464
        %v502 = vpack.c.b16 %v467, %v466
        %v503 = vpack.c.b16 %v469, %v468
        %v504 = vpack.c.b16 %v471, %v470
        %v505 = vpack.c.b16 %v473, %v472
        %538 = vmatpush.bf16.msra.mxu0 %v481
        %539 = vmatpush.bf16.msra.mxu0 %v480
        %540 = vmatpush.bf16.msra.mxu0 %v479
        %541 = vmatpush.bf16.msra.mxu0 %v478
        %542 = vmatpush.bf16.msra.mxu0 %v477
        %543 = vmatpush.bf16.msra.mxu0 %v476
        %544 = vmatpush.bf16.msra.mxu0 %v475
        %545 = vmatpush.bf16.msra.mxu0 %v474
        %546 = vmatmul.bf16.gmra.mxu0 %v338
        %v547 = vpop.f32.mrf.mxu0
        %v548 = vadd.f32 0.0, %v547
        %v549 = vpop.f32.mrf.mxu0
        %550 = vdwg.mxu0
        %551 = vmatpush.bf16.msra.mxu0 %v489
        %552 = vmatpush.bf16.msra.mxu0 %v488
        %553 = vmatpush.bf16.msra.mxu0 %v487
        %554 = vmatpush.bf16.msra.mxu0 %v486
        %555 = vmatpush.bf16.msra.mxu0 %v485
        %556 = vmatpush.bf16.msra.mxu0 %v484
        %557 = vmatpush.bf16.msra.mxu0 %v483
        %558 = vmatpush.bf16.msra.mxu0 %v482
        %559 = vmatmul.bf16.gmra.mxu0 %v339
        %v560 = vpop.f32.mrf.mxu0
        %v561 = vadd.f32 %v548, %v560
        %v562 = vpop.f32.mrf.mxu0
        %563 = vdwg.mxu0
        %564 = vmatpush.bf16.msra.mxu0 %v497
        %565 = vmatpush.bf16.msra.mxu0 %v496
        %566 = vmatpush.bf16.msra.mxu0 %v495
        %567 = vmatpush.bf16.msra.mxu0 %v494
        %568 = vmatpush.bf16.msra.mxu0 %v493
        %569 = vmatpush.bf16.msra.mxu0 %v492
        %570 = vmatpush.bf16.msra.mxu0 %v491
        %571 = vmatpush.bf16.msra.mxu0 %v490
        %572 = vmatmul.bf16.gmra.mxu0 %v340
        %v573 = vpop.f32.mrf.mxu0
        %v574 = vadd.f32 %v561, %v573
        %v575 = vpop.f32.mrf.mxu0
        %576 = vdwg.mxu0
        %577 = vmatpush.bf16.msra.mxu0 %v505
        %578 = vmatpush.bf16.msra.mxu0 %v504
        %579 = vmatpush.bf16.msra.mxu0 %v503
        %580 = vmatpush.bf16.msra.mxu0 %v502
        %581 = vmatpush.bf16.msra.mxu0 %v501
        %582 = vmatpush.bf16.msra.mxu0 %v500
        %583 = vmatpush.bf16.msra.mxu0 %v499
        %584 = vmatpush.bf16.msra.mxu0 %v498
        %585 = vmatmul.bf16.gmra.mxu0 %v341
        %v586 = vpop.f32.mrf.mxu0
        %v587 = vadd.f32 %v574, %v586
        %v588 = vpop.f32.mrf.mxu0
        %589 = vdwg.mxu0
        %v590 = vadd.f32 %v270, %v587
        %vm591 = vcmask 254976
        %592 = vst.msk [vmem:[#allocation2] sm:$0x3] %vm591, %v590
        %p593 = scmp.eq.s32.totalorder %s22, 1
        // Predicated region
        $region45: #{tpu_custom_call.1} parent=39 // pred_check
          %p594 = pneg %p593
        $region46: #{tpu_custom_call.1} parent=39 // pred_check_branch
          %596 = sbr.rel (%p594) target = $region48
        $region47: #{tpu_custom_call.1} parent=39 // pred_region
          %v597 = vld [vmem:[#allocation2] sm:$0x3]
          %v598 = vld [vmem:[%s2] sm:$0x1]
          %v600 = vperm.slane %v598, 0
          %v602 = vadd.f32 %v597, %v600
          %v603 = vmax.f32 %v602, 0.0
          %v604 = vpack.c.bf16 %v603, %v603
          %v605 = vld [vmem:[%s3] sm:$0xf]
          %v606 = vld [vmem:[%s3 + $0x4] sm:$0xf]
          %v607 = vld [vmem:[%s3 + $0x8] sm:$0xf]
          %v608 = vld [vmem:[%s3 + $0xc] sm:$0xf]
          %v609 = vld [vmem:[%s4] sm:$0x1]
          %v611 = vperm.slane %v609, 0
          %v617 = vunpack.c.l.b16 %v605
          %v618 = vunpack.c.l.b16 %v606
          %v619 = vunpack.c.l.b16 %v607
          %v620 = vunpack.c.l.b16 %v608
          %v621 = vpack.c.b16 %v618, %v617
          %v622 = vpack.c.b16 %v620, %v619
          %vm625 = vcmask 261120
          %v627 = vsel %vm625, %v604, 0
          %629 = vmatpush.bf16.msra.mxu0 0
          %630 = vmatpush.bf16.msra.mxu0 0
          %631 = vmatpush.bf16.msra.mxu0 0
          %632 = vmatpush.bf16.msra.mxu0 0
          %633 = vmatpush.bf16.msra.mxu0 0
          %634 = vmatpush.bf16.msra.mxu0 0
          %635 = vmatpush.bf16.msra.mxu0 %v622
          %636 = vmatpush.bf16.msra.mxu0 %v621
          %637 = vmatmul.bf16.gmra.mxu0 %v627
          %v638 = vpop.f32.mrf.mxu0
          %v639 = vadd.f32 %v611, %v638
          %v640 = vpop.f32.mrf.mxu0
          %641 = vdwg.mxu0
          %642 = vst [vmem:[#allocation3] sm:$0x3] %v639
        $region48: #{tpu_custom_call.1} parent=39 // pred_fallthru
          _
        // Predicated region
        $region49: #{tpu_custom_call.1} parent=39 // pred_check
          %p643 = pneg %p164
        $region50: #{tpu_custom_call.1} parent=39 // pred_check_branch
          %645 = sbr.rel (%p643) target = $region52
        $region51: #{tpu_custom_call.1} parent=39 // pred_region
          %647 = vsyncadd [#allocation4], 0
          %s648 = smul.addr %s21, 2
          %s649 = scalar_lea.hbm %s5, %s648
          %s651 = sshll.u32 [#allocation3], 4
          %s652 = int_to_ptr.vmem [resolvable:$true] %s651
          %s653 = sshll.u32 %s649, 4
          %s654 = int_to_ptr.hbm [resolvable:$true] %s653
          %656 = dma.vmem_to_hbm [thread:$0]  %s652, 32, %s654, [#allocation4]
        $region52: #{tpu_custom_call.1} parent=39 // pred_fallthru
          _
        // Predicated region
        $region53: #{tpu_custom_call.1} parent=39 // pred_check
          %p657 = pneg %p164
        $region54: #{tpu_custom_call.1} parent=39 // pred_check_branch
          %659 = sbr.rel (%p657) target = $region56
        $region55: #{tpu_custom_call.1} parent=39 // pred_region
          %661 = dma.done [#allocation4], 32
        $region56: #{tpu_custom_call.1} parent=39 // pred_fallthru
          _
      $region40: #{tpu_custom_call.1} parent=5 // pred_fallthru
        _
      %p662 = scmp.le.s32.totalorder 2, %s12
      // Predicated region
      $region57: #{tpu_custom_call.1} parent=5 // pred_check
        %p663 = pneg %p662
      $region58: #{tpu_custom_call.1} parent=5 // pred_check_branch
        %665 = sbr.rel (%p663) target = $region60
      $region59: #{tpu_custom_call.1} parent=5 // pred_region
        %s666 = ssub.s32 %s12, 2
      $region60: #{tpu_custom_call.1} parent=5 // pred_fallthru
        _
    $region6: #{tpu_custom_call.1} parent=1 // loop_footer
      %s16 = sadd.s32 1, %s12
    $region7: #{tpu_custom_call.1} parent=1 // loop_footer_branch
      %11 = sbr.rel target = $region3
    $region8: #{tpu_custom_call.1} parent=1 // loop_exit
      _
    %667 = vsyncpa [#allocation4], 1
    %s668 = scalar_lea.sflag [#allocation4], 1
    %669 = vsyncpa %s668, 1

</llo_original>
